<compile_context>
chip_gen: v7x
topology: tpu7x:2x2x1
jax: 0.10.0
libtpu: 0.0.40
codegen_flags: <defaults>
</compile_context>

<pallas_src>
import functools

import jax
import jax.numpy as jnp
from jax import lax
from jax.experimental import pallas as pl
from jax.experimental.pallas import tpu as pltpu


# ------------------------------- Pallas kernel -------------------------------
def _membership(n_rows, n_cols, m_groups, group, groups_on_rows):
    """0/1 matrix: entry is 1 iff (batch index) % m_groups == (group index)."""
    if groups_on_rows:                       # shape (M, B)
        mi = lax.broadcasted_iota(jnp.int32, (n_rows, n_cols), 0)
        bi = lax.broadcasted_iota(jnp.int32, (n_rows, n_cols), 1)
    else:                                    # shape (B, M)
        bi = lax.broadcasted_iota(jnp.int32, (n_rows, n_cols), 0)
        mi = lax.broadcasted_iota(jnp.int32, (n_rows, n_cols), 1)
    sel = bi == mi
    for g in range(1, group):
        sel = sel | (bi == g * m_groups + mi)
    return jnp.where(sel, 1.0, 0.0)          # f32 0/1


def disfinal_kernel(x_ref, w1u_ref, aux_ref, o_ref, *, group, m_groups, cout):
    # aux rows: 0 = wsum (mbstd-channel contribution per unit s, (1, HWC))
    #           1 = b1 tiled over positions (1, HWC)
    #           2 = b2 (padded to HWC)
    #           3 = w3 row (padded to HWC)
    #           4 = b3 (lane 0)
    #           5..7 = zero pad
    #           8..8+Cout = conv_2 weight, lane-dense (Cout, HWC)
    B = x_ref.shape[0]
    x = x_ref[...]                                             # (B, CHW) f32

    # ---- MinibatchStdDev: per-group std; torch grouping is interleaved
    #      (sample i belongs to group i % M, M = B // group_size).
    if m_groups == 1:
        mu = jnp.mean(x, axis=0, keepdims=True)                # (1, CHW)
        d = x - mu
        var = jnp.mean(d * d, axis=0, keepdims=True)           # (1, CHW)
        std = jnp.sqrt(var + 1e-8)
        s_g = jnp.mean(std, axis=1, keepdims=True)             # (1, 1)
        s_wsum = s_g * aux_ref[0:1, :]                         # (1, HWC), bcast B
    else:
        A = _membership(m_groups, B, m_groups, group, True)    # (M, B)
        At = _membership(B, m_groups, m_groups, group, False)  # (B, M)
        inv_g = 1.0 / group
        mu_g = jnp.dot(A, x, preferred_element_type=jnp.float32) * inv_g   # (M,CHW)
        d = x - jnp.dot(At, mu_g, preferred_element_type=jnp.float32)      # (B,CHW)
        var_g = jnp.dot(A, d * d, preferred_element_type=jnp.float32) * inv_g
        std = jnp.sqrt(var_g + 1e-8)                           # (M, CHW)
        s_g = jnp.mean(std, axis=1, keepdims=True)             # (M, 1)
        # Per-sample mbstd-channel contribution, scattered back group->sample.
        s_wsum = jnp.dot(At, s_g * aux_ref[0:1, :],
                         preferred_element_type=jnp.float32)   # (B, HWC)

    # ---- conv_1 (3x3, pad=1): one bf16 x bf16 -> f32 MXU matmul; output
    #      columns already ordered (h, w, c) so conv_2 needs no reshape.
    h1 = jnp.dot(x.astype(jnp.bfloat16), w1u_ref[...],
                 preferred_element_type=jnp.float32)           # (B, HWC)
    h1 = h1 + s_wsum + aux_ref[1:2, :]
    h1 = jnp.maximum(h1, 0.2 * h1)                             # LeakyReLU(0.2)

    # ---- conv_2 (4x4, valid on 4x4): transposed-RHS matmul against the
    #      lane-dense (Cout, HWC) rows folded into aux.
    w2t = aux_ref[8:8 + cout, :]                               # (Cout, HWC)
    h2 = lax.dot_general(h1, w2t, (((1,), (1,)), ((), ())),
                         preferred_element_type=jnp.float32)   # (B, Cout)
    h2 = h2 + aux_ref[2:3, :cout]
    h2 = jnp.maximum(h2, 0.2 * h2)                             # LeakyReLU(0.2)

    # ---- conv_3 (1x1 -> 1 channel): lane-dense (1, B) output row directly.
    w3row = aux_ref[3:4, :cout]                                # (1, Cout)
    out = lax.dot_general(w3row, h2, (((1,), (1,)), ((), ())),
                          preferred_element_type=jnp.float32)  # (1, B)
    o_ref[...] = (out + aux_ref[4:5, 0:1]).astype(o_ref.dtype)


# --------------------- one-time parameter repacking (hoisted) ----------------
def pack_disfinal_params(w1, b1, w2, b2, w3, b3, H=4, W=4):
    """Run ONCE per parameter update; returns (w1u_bf16, aux) for the kernel."""
    Cin = w1.shape[0]            # conv_1 weight: (Cin, Cin+1, 3, 3)
    Cout = w2.shape[0]           # conv_2 weight: (Cout, Cin, 4, 4)
    CHW = Cin * H * W
    HWC = H * W * Cin
    assert Cout <= HWC, "aux slab assumes Cout <= H*W*C"

    conv = lambda lhs, rhs, pad: lax.conv_general_dilated(
        lhs, rhs, (1, 1), [(pad, pad), (pad, pad)],
        dimension_numbers=("NCHW", "OIHW", "NCHW"),
        precision=lax.Precision.HIGHEST)

    # conv_1 restricted to the real input channels, extracted as a dense linear
    # map (NCHW-flat input index) -> ((h, w, c)-flat output index).
    eye = jnp.eye(CHW, dtype=jnp.float32).reshape(CHW, Cin, H, W)
    w1_x = w1[:, :Cin, :, :].astype(jnp.float32)
    col = conv(eye, w1_x, 1)                                   # (CHW, Cin, H, W)
    w1u = jnp.transpose(col, (0, 2, 3, 1)).reshape(CHW, HWC)
    w1u = w1u.astype(jnp.bfloat16)       # bf16 weights halve the HBM transfer

    # Contribution of the constant mbstd channel per unit of s.
    w1_s = w1[:, Cin:Cin + 1, :, :].astype(jnp.float32)        # (Cin, 1, 3, 3)
    ws = conv(jnp.ones((1, 1, H, W), jnp.float32), w1_s, 1)    # (1, Cin, H, W)
    wsum1 = jnp.transpose(ws, (0, 2, 3, 1)).reshape(1, HWC)

    # b1 tiled into (position, channel) order.
    b1t = jnp.tile(b1.astype(jnp.float32).reshape(1, Cin), (1, H * W))

    # conv_2 (4x4 valid) lane-dense: rows = Cout, columns ordered (h, w, c_in).
    w2t = jnp.transpose(w2.astype(jnp.float32), (0, 2, 3, 1)).reshape(Cout, HWC)

    def pad_row(v):
        v = jnp.asarray(v, jnp.float32).reshape(1, -1)
        return jnp.pad(v, ((0, 0), (0, HWC - v.shape[1])))

    aux = jnp.concatenate(
        [wsum1, b1t, pad_row(b2), pad_row(w3.reshape(-1)), pad_row(b3),
         jnp.zeros((3, HWC), jnp.float32), w2t], axis=0)       # (8 + Cout, HWC)
    return w1u, aux


# ------------------------------ forward wrapper -------------------------------
def _full_spec(shape):
    nd = len(shape)
    return pl.BlockSpec(shape, lambda i, _nd=nd: (0,) * _nd)


@functools.partial(jax.jit, static_argnames=("group_size",))
def dis_final_block(x, w1u, aux, group_size=4):
    """x: (B, C, 4, 4) NCHW.  Returns shape (B,) like y.view(-1)."""
    B, C, H, W = x.shape
    assert H == 4 and W == 4, "DisFinalBlock operates on the 4x4 final resolution"
    assert B <= group_size or B % group_size == 0, \
        "batch must be <= group_size or a multiple of it (torch assert)"
    CHW = C * H * W
    HWC = w1u.shape[1]
    assert w1u.shape[0] == CHW
    cout = aux.shape[0] - 8                    # aux layout: 8 header rows + Cout

    # Guard the dense conv_1 unroll; realistic channel counts need tiling.
    assert w1u.size * w1u.dtype.itemsize <= 16 * 1024 * 1024, \
        "dense conv_1 unroll too large; tile w1u over HWC for big channel counts"
    # TODO(synk): tile w1u over the HWC axis (grid over N, K resident) or use a
    #             9-tap channel-blocked conv_1 once C >= ~128 (VMEM on v7x).

    group = group_size if B > group_size else B      # mbstd group size actually used
    m_groups = B // group                            # number of groups

    x2d = x.reshape(B, CHW)                          # only wrapper-side op on x

    kernel = functools.partial(
        disfinal_kernel, group=group, m_groups=m_groups, cout=cout)

    bytes_accessed = int(x2d.size * x2d.dtype.itemsize
                         + w1u.size * w1u.dtype.itemsize
                         + aux.size * aux.dtype.itemsize
                         + B * 4)
    flops = int(2 * B * CHW * HWC + 2 * B * HWC * cout + 2 * B * cout
                + 6 * m_groups * B * CHW)            # incl. group-stat matmuls
    cost = pl.CostEstimate(flops=flops,
                           transcendentals=int(m_groups * CHW),
                           bytes_accessed=bytes_accessed)

    vmem_budget = int(min(64 << 20, max(4 << 20, 3 * bytes_accessed + (2 << 20))))

    args = (x2d, w1u, aux)
    out = pl.pallas_call(
        kernel,
        out_shape=jax.ShapeDtypeStruct((1, B), jnp.float32),   # lane-dense row
        grid=(1,),
        in_specs=[_full_spec(a.shape) for a in args],
        out_specs=_full_spec((1, B)),
        compiler_params=pltpu.CompilerParams(
            dimension_semantics=("arbitrary",),
            vmem_limit_bytes=vmem_budget),
        cost_estimate=cost,
    )(*args)
    return out.reshape(-1)


# ----------------------------- pure-JAX reference -----------------------------
def reference(x, w1, b1, w2, b2, w3, b3, group_size=4):
    B, C, H, W = x.shape
    g = group_size if B > group_size else B
    if B > group_size:
        assert B % group_size == 0
    # MinibatchStdDev (matches the torch module, incl. interleaved grouping).
    y = x.reshape(g, -1, C, H, W)
    y = y - jnp.mean(y, axis=0, keepdims=True)
    y = jnp.sqrt(jnp.mean(y * y, axis=0) + 1e-8)               # (M, C, H, W)
    y = jnp.mean(y, axis=(1, 2, 3)).reshape(-1, 1, 1, 1)       # (M, 1, 1, 1)
    y = jnp.tile(y, (g, 1, H, W))                              # (B, 1, H, W)
    y = jnp.concatenate([x, y], axis=1)

    def conv(z, w, b, pad):
        o = lax.conv_general_dilated(
            z, w, (1, 1), [(pad, pad), (pad, pad)],
            dimension_numbers=("NCHW", "OIHW", "NCHW"),
            precision=lax.Precision.HIGHEST)
        return o + b[None, :, None, None]

    lrelu = lambda v: jnp.maximum(v, 0.2 * v)
    y = lrelu(conv(y, w1, b1, 1))
    y = lrelu(conv(y, w2, b2, 0))
    y = conv(y, w3, b3, 0)
    return y.reshape(-1)


if __name__ == "__main__":
    B, C_in, C_out, H, W = 16, 8, 8, 4, 4          # 4 mbstd groups of 4
    key = jax.random.PRNGKey(0)
    ks = jax.random.split(key, 7)
    x = jax.random.normal(ks[0], (B, C_in, H, W), jnp.float32)
    w1 = 0.1 * jax.random.normal(ks[1], (C_in, C_in + 1, 3, 3), jnp.float32)
    b1 = 0.1 * jax.random.normal(ks[2], (C_in,), jnp.float32)
    w2 = 0.1 * jax.random.normal(ks[3], (C_out, C_in, 4, 4), jnp.float32)
    b2 = 0.1 * jax.random.normal(ks[4], (C_out,), jnp.float32)
    w3 = 0.1 * jax.random.normal(ks[5], (1, C_out, 1, 1), jnp.float32)
    b3 = 0.1 * jax.random.normal(ks[6], (1,), jnp.float32)

    # Parameter repacking: done once, off the per-call path.
    w1u, aux = jax.block_until_ready(
        pack_disfinal_params(w1, b1, w2, b2, w3, b3, H=H, W=W))

    # Multi-group batch (B = 16 -> 4 interleaved mbstd groups of 4).
    out = jax.block_until_ready(dis_final_block(x, w1u, aux, group_size=4))
    ref = jax.block_until_ready(reference(x, w1, b1, w2, b2, w3, b3, group_size=4))
    assert out.shape == (B,), out.shape
    assert jnp.allclose(out, ref, rtol=1e-2, atol=1e-2), (out, ref)

    # Small batch (B <= group_size -> single group over the whole batch).
    xs = x[:3]
    out_s = jax.block_until_ready(dis_final_block(xs, w1u, aux, group_size=4))
    ref_s = jax.block_until_ready(reference(xs, w1, b1, w2, b2, w3, b3, group_size=4))
    assert out_s.shape == (3,), out_s.shape
    assert jnp.allclose(out_s, ref_s, rtol=1e-2, atol=1e-2), (out_s, ref_s)

    print("KERNEL_OK")
</pallas_src>

<mosaic_0001>
module attributes {stable_mosaic.version = 11 : i64} {
  func.func @disfinal_kernel(%arg0: i32, %arg1: memref<16x128xf32, #tpu.memory_space<vmem>>, %arg2: memref<128x128xbf16, #tpu.memory_space<vmem>>, %arg3: memref<16x128xf32, #tpu.memory_space<vmem>>, %arg4: memref<1x16xf32, #tpu.memory_space<vmem>>) attributes {dimension_semantics = [#tpu.dimension_semantics<arbitrary>], iteration_bounds = array<i64: 1>, scalar_prefetch = 0 : i64, scratch_operands = 0 : i64, tpu.core_type = #tpu.core_type<tc>, window_params = [{pipeline_mode = #tpu.pipeline_mode<synchronous>, transform_indices = @transform_0, window_bounds = array<i64: 16, 128>}, {pipeline_mode = #tpu.pipeline_mode<synchronous>, transform_indices = @transform_1, window_bounds = array<i64: 128, 128>}, {pipeline_mode = #tpu.pipeline_mode<synchronous>, transform_indices = @transform_2, window_bounds = array<i64: 16, 128>}, {pipeline_mode = #tpu.pipeline_mode<synchronous>, transform_indices = @transform_3, window_bounds = array<i64: 1, 16>}]} {
    %c0 = arith.constant 0 : index
    %c0_0 = arith.constant 0 : index
    %0 = vector.load %arg1[%c0, %c0_0] : memref<16x128xf32, #tpu.memory_space<vmem>>, vector<16x128xf32>
    %1 = tpu.iota {dimensions = array<i32: 0>} : vector<4x16xi32>
    %2 = tpu.iota {dimensions = array<i32: 1>} : vector<4x16xi32>
    %3 = arith.cmpi eq, %2, %1 : vector<4x16xi32>
    %c4_i32 = arith.constant 4 : i32
    %4 = vector.broadcast %c4_i32 : i32 to vector<4x16xi32>
    %5 = arith.addi %4, %1 : vector<4x16xi32>
    %6 = arith.cmpi eq, %2, %5 : vector<4x16xi32>
    %7 = arith.ori %3, %6 : vector<4x16xi1>
    %c8_i32 = arith.constant 8 : i32
    %8 = vector.broadcast %c8_i32 : i32 to vector<4x16xi32>
    %9 = arith.addi %8, %1 : vector<4x16xi32>
    %10 = arith.cmpi eq, %2, %9 : vector<4x16xi32>
    %11 = arith.ori %7, %10 : vector<4x16xi1>
    %c12_i32 = arith.constant 12 : i32
    %12 = vector.broadcast %c12_i32 : i32 to vector<4x16xi32>
    %13 = arith.addi %12, %1 : vector<4x16xi32>
    %14 = arith.cmpi eq, %2, %13 : vector<4x16xi32>
    %15 = arith.ori %11, %14 : vector<4x16xi1>
    %cst = arith.constant 1.000000e+00 : f32
    %cst_1 = arith.constant 0.000000e+00 : f32
    %16 = vector.broadcast %cst : f32 to vector<4x16xf32>
    %17 = vector.broadcast %cst_1 : f32 to vector<4x16xf32>
    %18 = arith.select %15, %16, %17 : vector<4x16xi1>, vector<4x16xf32>
    %19 = tpu.iota {dimensions = array<i32: 0>} : vector<16x4xi32>
    %20 = tpu.iota {dimensions = array<i32: 1>} : vector<16x4xi32>
    %21 = arith.cmpi eq, %19, %20 : vector<16x4xi32>
    %c4_i32_2 = arith.constant 4 : i32
    %22 = vector.broadcast %c4_i32_2 : i32 to vector<16x4xi32>
    %23 = arith.addi %22, %20 : vector<16x4xi32>
    %24 = arith.cmpi eq, %19, %23 : vector<16x4xi32>
    %25 = arith.ori %21, %24 : vector<16x4xi1>
    %c8_i32_3 = arith.constant 8 : i32
    %26 = vector.broadcast %c8_i32_3 : i32 to vector<16x4xi32>
    %27 = arith.addi %26, %20 : vector<16x4xi32>
    %28 = arith.cmpi eq, %19, %27 : vector<16x4xi32>
    %29 = arith.ori %25, %28 : vector<16x4xi1>
    %c12_i32_4 = arith.constant 12 : i32
    %30 = vector.broadcast %c12_i32_4 : i32 to vector<16x4xi32>
    %31 = arith.addi %30, %20 : vector<16x4xi32>
    %32 = arith.cmpi eq, %19, %31 : vector<16x4xi32>
    %33 = arith.ori %29, %32 : vector<16x4xi1>
    %cst_5 = arith.constant 1.000000e+00 : f32
    %cst_6 = arith.constant 0.000000e+00 : f32
    %34 = vector.broadcast %cst_5 : f32 to vector<16x4xf32>
    %35 = vector.broadcast %cst_6 : f32 to vector<16x4xf32>
    %36 = arith.select %33, %34, %35 : vector<16x4xi1>, vector<16x4xf32>
    %cst_7 = arith.constant dense<0.000000e+00> : vector<4x128xf32>
    %37 = tpu.matmul %18, %0, %cst_7 {dimension_numbers = #tpu.dot_dimension_numbers<[1], [0], [0], [1], [0, 0, 1, 1], [], []>} : vector<4x16xf32>, vector<16x128xf32>, vector<4x128xf32> -> vector<4x128xf32>
    %cst_8 = arith.constant 2.500000e-01 : f32
    %38 = vector.broadcast %cst_8 : f32 to vector<4x128xf32>
    %39 = arith.mulf %37, %38 : vector<4x128xf32>
    %cst_9 = arith.constant dense<0.000000e+00> : vector<16x128xf32>
    %40 = tpu.matmul %36, %39, %cst_9 {dimension_numbers = #tpu.dot_dimension_numbers<[1], [0], [0], [1], [0, 0, 1, 1], [], []>} : vector<16x4xf32>, vector<4x128xf32>, vector<16x128xf32> -> vector<16x128xf32>
    %41 = arith.subf %0, %40 : vector<16x128xf32>
    %42 = arith.mulf %41, %41 : vector<16x128xf32>
    %cst_10 = arith.constant dense<0.000000e+00> : vector<4x128xf32>
    %43 = tpu.matmul %18, %42, %cst_10 {dimension_numbers = #tpu.dot_dimension_numbers<[1], [0], [0], [1], [0, 0, 1, 1], [], []>} : vector<4x16xf32>, vector<16x128xf32>, vector<4x128xf32> -> vector<4x128xf32>
    %cst_11 = arith.constant 2.500000e-01 : f32
    %44 = vector.broadcast %cst_11 : f32 to vector<4x128xf32>
    %45 = arith.mulf %43, %44 : vector<4x128xf32>
    %cst_12 = arith.constant 9.99999993E-9 : f32
    %46 = vector.broadcast %cst_12 : f32 to vector<4x128xf32>
    %47 = arith.addf %45, %46 : vector<4x128xf32>
    %48 = math.sqrt %47 : vector<4x128xf32>
    %cst_13 = arith.constant dense<0.000000e+00> : vector<4xf32>
    %49 = vector.multi_reduction <add>, %48, %cst_13 [1] : vector<4x128xf32> to vector<4xf32>
    %50 = vector.shape_cast %49 : vector<4xf32> to vector<4x1xf32>
    %cst_14 = arith.constant 1.280000e+02 : f32
    %51 = vector.broadcast %cst_14 : f32 to vector<4x1xf32>
    %52 = arith.divf %50, %51 : vector<4x1xf32>
    %c0_15 = arith.constant 0 : index
    %c0_16 = arith.constant 0 : index
    %53 = vector.load %arg3[%c0_15, %c0_16] : memref<16x128xf32, #tpu.memory_space<vmem>>, vector<1x128xf32>
    %54 = vector.broadcast %52 : vector<4x1xf32> to vector<4x128xf32>
    %55 = vector.broadcast %53 : vector<1x128xf32> to vector<4x128xf32>
    %56 = arith.mulf %54, %55 : vector<4x128xf32>
    %cst_17 = arith.constant dense<0.000000e+00> : vector<16x128xf32>
    %57 = tpu.matmul %36, %56, %cst_17 {dimension_numbers = #tpu.dot_dimension_numbers<[1], [0], [0], [1], [0, 0, 1, 1], [], []>} : vector<16x4xf32>, vector<4x128xf32>, vector<16x128xf32> -> vector<16x128xf32>
    %58 = arith.truncf %0 : vector<16x128xf32> to vector<16x128xbf16>
    %c0_18 = arith.constant 0 : index
    %c0_19 = arith.constant 0 : index
    %59 = vector.load %arg2[%c0_18, %c0_19] : memref<128x128xbf16, #tpu.memory_space<vmem>>, vector<128x128xbf16>
    %cst_20 = arith.constant dense<0.000000e+00> : vector<16x128xf32>
    %60 = tpu.matmul %58, %59, %cst_20 {dimension_numbers = #tpu.dot_dimension_numbers<[1], [0], [0], [1], [0, 0, 1, 1], [], []>} : vector<16x128xbf16>, vector<128x128xbf16>, vector<16x128xf32> -> vector<16x128xf32>
    %61 = arith.addf %60, %57 : vector<16x128xf32>
    %c1 = arith.constant 1 : index
    %c0_21 = arith.constant 0 : index
    %62 = vector.load %arg3[%c1, %c0_21] : memref<16x128xf32, #tpu.memory_space<vmem>>, vector<1x128xf32>
    %63 = vector.broadcast %62 : vector<1x128xf32> to vector<16x128xf32>
    %64 = arith.addf %61, %63 : vector<16x128xf32>
    %cst_22 = arith.constant 2.000000e-01 : f32
    %65 = vector.broadcast %cst_22 : f32 to vector<16x128xf32>
    %66 = arith.mulf %65, %64 : vector<16x128xf32>
    %67 = arith.maximumf %64, %66 : vector<16x128xf32>
    %c8 = arith.constant 8 : index
    %c0_23 = arith.constant 0 : index
    %68 = vector.load %arg3[%c8, %c0_23] : memref<16x128xf32, #tpu.memory_space<vmem>>, vector<8x128xf32>
    %cst_24 = arith.constant dense<0.000000e+00> : vector<16x8xf32>
    %69 = tpu.matmul %67, %68, %cst_24 {dimension_numbers = #tpu.dot_dimension_numbers<[1], [1], [0], [0], [0, 0, 1, 0], [], []>} : vector<16x128xf32>, vector<8x128xf32>, vector<16x8xf32> -> vector<16x8xf32>
    %c2 = arith.constant 2 : index
    %c0_25 = arith.constant 0 : index
    %70 = vector.load %arg3[%c2, %c0_25] : memref<16x128xf32, #tpu.memory_space<vmem>>, vector<1x8xf32>
    %71 = vector.broadcast %70 : vector<1x8xf32> to vector<16x8xf32>
    %72 = arith.addf %69, %71 : vector<16x8xf32>
    %cst_26 = arith.constant 2.000000e-01 : f32
    %73 = vector.broadcast %cst_26 : f32 to vector<16x8xf32>
    %74 = arith.mulf %73, %72 : vector<16x8xf32>
    %75 = arith.maximumf %72, %74 : vector<16x8xf32>
    %c3 = arith.constant 3 : index
    %c0_27 = arith.constant 0 : index
    %76 = vector.load %arg3[%c3, %c0_27] : memref<16x128xf32, #tpu.memory_space<vmem>>, vector<1x8xf32>
    %cst_28 = arith.constant dense<0.000000e+00> : vector<1x16xf32>
    %77 = tpu.matmul %76, %75, %cst_28 {dimension_numbers = #tpu.dot_dimension_numbers<[1], [1], [0], [0], [0, 0, 1, 0], [], []>} : vector<1x8xf32>, vector<16x8xf32>, vector<1x16xf32> -> vector<1x16xf32>
    %c4 = arith.constant 4 : index
    %c0_29 = arith.constant 0 : index
    %78 = vector.load %arg3[%c4, %c0_29] : memref<16x128xf32, #tpu.memory_space<vmem>>, vector<1x1xf32>
    %79 = vector.broadcast %78 : vector<1x1xf32> to vector<1x16xf32>
    %80 = arith.addf %77, %79 : vector<1x16xf32>
    %c0_30 = arith.constant 0 : index
    %c0_31 = arith.constant 0 : index
    %81 = vector.load %arg4[%c0_30, %c0_31] : memref<1x16xf32, #tpu.memory_space<vmem>>, vector<1x16xf32>
    tpu.vector_store %arg4[%c0_30, %c0_31], %80 {strides = array<i32>} : memref<1x16xf32, #tpu.memory_space<vmem>>, vector<1x16xf32>,
    return
  }
  func.func @transform_0(%arg0: i32) -> (i32, i32) {
    %c0_i32 = arith.constant 0 : i32
    %c0_i32_0 = arith.constant 0 : i32
    %c0_i32_1 = arith.constant 0 : i32
    return %c0_i32, %c0_i32_0 : i32, i32
  }
  func.func @transform_1(%arg0: i32) -> (i32, i32) {
    %c0_i32 = arith.constant 0 : i32
    %c0_i32_0 = arith.constant 0 : i32
    %c0_i32_1 = arith.constant 0 : i32
    return %c0_i32, %c0_i32_0 : i32, i32
  }
  func.func @transform_2(%arg0: i32) -> (i32, i32) {
    %c0_i32 = arith.constant 0 : i32
    %c0_i32_0 = arith.constant 0 : i32
    %c0_i32_1 = arith.constant 0 : i32
    return %c0_i32, %c0_i32_0 : i32, i32
  }
  func.func @transform_3(%arg0: i32) -> (i32, i32) {
    %c0_i32 = arith.constant 0 : i32
    %c0_i32_0 = arith.constant 0 : i32
    %c0_i32_1 = arith.constant 0 : i32
    return %c0_i32, %c0_i32_0 : i32, i32
  }
}

</mosaic_0001>

<llo_original>
// kernel: dis_final_block.1
$region0: #{dis_final_block.1}
  #allocation0 [shape = 'u32[]', space=smem, size = 0x4, offset = 0x4, fixed_abs, tag = 'smem constant byte address 0x4 - core index']
  #allocation1 [shape = 'u32[144,128]{1,0:T(1,128)}', space=vmem, size = 0x12000, scoped, tag = 'internal scratch']
  %s0 = inlined_call_operand.vmem [shape: f32[16,128], index: 0, kind: input, shape index: {}]
  %s1 = inlined_call_operand.vmem [shape: bf16[128,128], index: 1, kind: input, shape index: {}]
  %s2 = inlined_call_operand.vmem [shape: f32[16,128], index: 2, kind: input, shape index: {}]
  %s3 = inlined_call_operand.hbm [shape: f32[1,16], index: 3, kind: output, shape index: {}]
  %s4 = sld [smem:[#allocation0]]
  $region22: #{dis_final_block.1} parent=0
    _
  %s6 = ssub.s32 1, %s4
  %s7 = scalar_select 0, %s6, %s4
  $region1: #{dis_final_block.1} parent=0
    #allocation2 [shape = 'u8[512]{0}', space=vmem, size = 0x400, scoped, tag = 'output window, operand 0, single buffered']
    #allocation3 [shape = 's32[1]{0}', space=sflag, size = 0x4, scoped, tag = 'scoped memory for dis_final_block.1']
    %8 = vsyncpa [#allocation3], 0
    // Predicated region
    $region2: #{dis_final_block.1} parent=1 // pred_check
      _
    $region3: #{dis_final_block.1} parent=1 // pred_check_branch
      %10 = sbr.rel (0) target = $region5
    $region4: #{dis_final_block.1} parent=1 // pred_region
      _
    $region5: #{dis_final_block.1} parent=1 // pred_fallthru
      _
    // Predicated region
    $region6: #{dis_final_block.1} parent=1 // pred_check
      _
    $region7: #{dis_final_block.1} parent=1 // pred_check_branch
      %12 = sbr.rel (0) target = $region9
    $region8: #{dis_final_block.1} parent=1 // pred_region
      _
    $region9: #{dis_final_block.1} parent=1 // pred_fallthru
      _
    // Predicated region
    $region10: #{dis_final_block.1} parent=1 // pred_check
      _
    $region11: #{dis_final_block.1} parent=1 // pred_check_branch
      %14 = sbr.rel (0) target = $region13
    $region12: #{dis_final_block.1} parent=1 // pred_region
      _
    $region13: #{dis_final_block.1} parent=1 // pred_fallthru
      _
    %v16 = vld [vmem:[%s0] sm:$0xff]
    %v17 = vld [vmem:[%s0 + $0x8] sm:$0xff]
    %v18 = vlaneseq
    %v19 = vshrl.u32 %v18, 7
    %v20 = vlaneseq
    %v21 = vand.u32 %v20, 127
    %vm22 = vcmp.eq.s32.totalorder %v21, %v19
    %v23 = vadd.s32 %v19, 4
    %vm24 = vcmp.eq.s32.totalorder %v21, %v23
    %vm25 = vmor %vm22, %vm24
    %v26 = vadd.s32 %v19, 8
    %vm27 = vcmp.eq.s32.totalorder %v21, %v26
    %vm28 = vmor %vm25, %vm27
    %v29 = vadd.s32 %v19, 12
    %vm30 = vcmp.eq.s32.totalorder %v21, %v29
    %vm31 = vmor %vm28, %vm30
    %v32 = vsel %vm31, 1.0, 0.0
    %vm33 = vcmp.eq.s32.totalorder %v19, %v21
    %vm34 = vcmp.eq.s32.totalorder %v26, %v21
    %v35 = vadd.s32 %v21, 4
    %vm36 = vcmp.eq.s32.totalorder %v19, %v35
    %vm37 = vcmp.eq.s32.totalorder %v26, %v35
    %vm38 = vmor %vm33, %vm36
    %vm39 = vmor %vm34, %vm37
    %v40 = vadd.s32 %v21, 8
    %vm41 = vcmp.eq.s32.totalorder %v19, %v40
    %vm42 = vcmp.eq.s32.totalorder %v26, %v40
    %vm43 = vmor %vm38, %vm41
    %vm44 = vmor %vm39, %vm42
    %v45 = vadd.s32 %v21, 12
    %vm46 = vcmp.eq.s32.totalorder %v19, %v45
    %vm47 = vcmp.eq.s32.totalorder %v26, %v45
    %vm48 = vmor %vm43, %vm46
    %vm49 = vmor %vm44, %vm47
    %v50 = vsel %vm48, 1.0, 0.0
    %v51 = vsel %vm49, 1.0, 0.0
    %vm52 = vcmask 130048
    %v54 = vsel %vm52, %v32, 0
    %56 = vmatprep.subr.mxu0 0.0
    %57 = vmatpush1.msra.mxu0 %v16
    %58 = vmatprep.subr.mxu0 0.0
    %59 = vmatpush1.msra.mxu0 %v17
    %60 = vmatprep.subr.mxu0 0.0
    %61 = vmatpush1.msra.mxu0 0.0
    %62 = vmatprep.subr.mxu0 0.0
    %63 = vmatpush1.msra.mxu0 0.0
    %64 = vmatprep.subr.mxu0 0.0
    %65 = vmatpush1.msra.mxu0 0.0
    %66 = vmatprep.subr.mxu0 0.0
    %67 = vmatpush1.msra.mxu0 0.0
    %68 = vmatprep.subr.mxu0 0.0
    %69 = vmatpush1.msra.mxu0 0.0
    %70 = vmatprep.subr.mxu0 0.0
    %71 = vmatpush1.msra.mxu0 0.0
    %72 = vmatprep.subr.mxu0 0.0
    %73 = vmatpush1.msra.mxu0 0.0
    %74 = vmatprep.subr.mxu0 0.0
    %75 = vmatpush1.msra.mxu0 0.0
    %76 = vmatprep.subr.mxu0 0.0
    %77 = vmatpush1.msra.mxu0 0.0
    %78 = vmatprep.subr.mxu0 0.0
    %79 = vmatpush1.msra.mxu0 0.0
    %80 = vmatprep.subr.mxu0 0.0
    %81 = vmatpush1.msra.mxu0 0.0
    %82 = vmatprep.subr.mxu0 0.0
    %83 = vmatpush1.msra.mxu0 0.0
    %84 = vmatprep.subr.mxu0 0.0
    %85 = vmatpush1.msra.mxu0 0.0
    %86 = vmatprep.subr.mxu0 0.0
    %87 = vmatpush1.msra.mxu0 0.0
    %88 = vmatprep.subr.mxu0 0.0
    %89 = vmatpush1.msra.mxu0 0.0
    %90 = vmatprep.subr.mxu0 0.0
    %91 = vmatpush1.msra.mxu0 0.0
    %92 = vmatprep.subr.mxu0 0.0
    %93 = vmatpush1.msra.mxu0 0.0
    %94 = vmatprep.subr.mxu0 0.0
    %95 = vmatpush1.msra.mxu0 0.0
    %96 = vmatprep.subr.mxu0 0.0
    %97 = vmatpush1.msra.mxu0 0.0
    %98 = vmatprep.subr.mxu0 0.0
    %99 = vmatpush1.msra.mxu0 0.0
    %100 = vmatprep.subr.mxu0 0.0
    %101 = vmatpush1.msra.mxu0 0.0
    %102 = vmatprep.subr.mxu0 0.0
    %103 = vmatpush1.msra.mxu0 0.0
    %104 = vmatprep.subr.mxu0 0.0
    %105 = vmatpush1.msra.mxu0 0.0
    %106 = vmatprep.subr.mxu0 0.0
    %107 = vmatpush1.msra.mxu0 0.0
    %108 = vmatprep.subr.mxu0 0.0
    %109 = vmatpush1.msra.mxu0 0.0
    %110 = vmatprep.subr.mxu0 0.0
    %111 = vmatpush1.msra.mxu0 0.0
    %112 = vmatprep.subr.mxu0 0.0
    %113 = vmatpush1.msra.mxu0 0.0
    %114 = vmatprep.subr.mxu0 0.0
    %115 = vmatpush1.msra.mxu0 0.0
    %116 = vmatprep.subr.mxu0 0.0
    %117 = vmatpush1.msra.mxu0 0.0
    %118 = vmatprep.subr.mxu0 0.0
    %119 = vmatpush1.msra.mxu0 0.0
    %120 = vmatprep.mubr.f32.mxu0 0.0
    %121 = vmatmul.mubr.f32.gmra.mrb[0].mxu0 %v54
    %v122 = vpop.f32.mrb[0].mxu0
    %v123 = vadd.f32 0.0, %v122
    %v124 = vpop.f32.mrb[0].mxu0
    %125 = vdwg.mxu0
    %v126 = vmul.f32 %v123, 0.25
    %vm127 = vcmask 31744
    %v129 = vsel %vm127, %v50, 0
    %v132 = vsel %vm127, %v51, 0
    %vm134 = vcmask 1043456
    %v136 = vsel %vm134, %v126, 0
    %138 = vmatprep.subr.mxu0 0.0
    %139 = vmatpush1.msra.mxu0 %v136
    %140 = vmatprep.subr.mxu0 0.0
    %141 = vmatpush1.msra.mxu0 0.0
    %142 = vmatprep.subr.mxu0 0.0
    %143 = vmatpush1.msra.mxu0 0.0
    %144 = vmatprep.subr.mxu0 0.0
    %145 = vmatpush1.msra.mxu0 0.0
    %146 = vmatprep.subr.mxu0 0.0
    %147 = vmatpush1.msra.mxu0 0.0
    %148 = vmatprep.subr.mxu0 0.0
    %149 = vmatpush1.msra.mxu0 0.0
    %150 = vmatprep.subr.mxu0 0.0
    %151 = vmatpush1.msra.mxu0 0.0
    %152 = vmatprep.subr.mxu0 0.0
    %153 = vmatpush1.msra.mxu0 0.0
    %154 = vmatprep.subr.mxu0 0.0
    %155 = vmatpush1.msra.mxu0 0.0
    %156 = vmatprep.subr.mxu0 0.0
    %157 = vmatpush1.msra.mxu0 0.0
    %158 = vmatprep.subr.mxu0 0.0
    %159 = vmatpush1.msra.mxu0 0.0
    %160 = vmatprep.subr.mxu0 0.0
    %161 = vmatpush1.msra.mxu0 0.0
    %162 = vmatprep.subr.mxu0 0.0
    %163 = vmatpush1.msra.mxu0 0.0
    %164 = vmatprep.subr.mxu0 0.0
    %165 = vmatpush1.msra.mxu0 0.0
    %166 = vmatprep.subr.mxu0 0.0
    %167 = vmatpush1.msra.mxu0 0.0
    %168 = vmatprep.subr.mxu0 0.0
    %169 = vmatpush1.msra.mxu0 0.0
    %170 = vmatprep.subr.mxu0 0.0
    %171 = vmatpush1.msra.mxu0 0.0
    %172 = vmatprep.subr.mxu0 0.0
    %173 = vmatpush1.msra.mxu0 0.0
    %174 = vmatprep.subr.mxu0 0.0
    %175 = vmatpush1.msra.mxu0 0.0
    %176 = vmatprep.subr.mxu0 0.0
    %177 = vmatpush1.msra.mxu0 0.0
    %178 = vmatprep.subr.mxu0 0.0
    %179 = vmatpush1.msra.mxu0 0.0
    %180 = vmatprep.subr.mxu0 0.0
    %181 = vmatpush1.msra.mxu0 0.0
    %182 = vmatprep.subr.mxu0 0.0
    %183 = vmatpush1.msra.mxu0 0.0
    %184 = vmatprep.subr.mxu0 0.0
    %185 = vmatpush1.msra.mxu0 0.0
    %186 = vmatprep.subr.mxu0 0.0
    %187 = vmatpush1.msra.mxu0 0.0
    %188 = vmatprep.subr.mxu0 0.0
    %189 = vmatpush1.msra.mxu0 0.0
    %190 = vmatprep.subr.mxu0 0.0
    %191 = vmatpush1.msra.mxu0 0.0
    %192 = vmatprep.subr.mxu0 0.0
    %193 = vmatpush1.msra.mxu0 0.0
    %194 = vmatprep.subr.mxu0 0.0
    %195 = vmatpush1.msra.mxu0 0.0
    %196 = vmatprep.subr.mxu0 0.0
    %197 = vmatpush1.msra.mxu0 0.0
    %198 = vmatprep.subr.mxu0 0.0
    %199 = vmatpush1.msra.mxu0 0.0
    %200 = vmatprep.subr.mxu0 0.0
    %201 = vmatpush1.msra.mxu0 0.0
    %202 = vmatprep.mubr.f32.mxu0 0.0
    %203 = vmatmul.mubr.f32.gmra.mrb[0].mxu0 %v129
    %v204 = vpop.f32.mrb[0].mxu0
    %v205 = vadd.f32 0.0, %v204
    %v206 = vpop.f32.mrb[0].mxu0
    %207 = vmatprep.mubr.f32.mxu0 0.0
    %208 = vmatmul.mubr.f32.gmra.mrb[0].mxu0 %v132
    %v209 = vpop.f32.mrb[0].mxu0
    %v210 = vadd.f32 0.0, %v209
    %v211 = vpop.f32.mrb[0].mxu0
    %212 = vdwg.mxu0
    %v213 = vsub.f32 %v16, %v205
    %v214 = vsub.f32 %v17, %v210
    %v215 = vmul.f32 %v213, %v213
    %v216 = vmul.f32 %v214, %v214
    %217 = vmatprep.subr.mxu0 0.0
    %218 = vmatpush1.msra.mxu0 %v215
    %219 = vmatprep.subr.mxu0 0.0
    %220 = vmatpush1.msra.mxu0 %v216
    %221 = vmatprep.subr.mxu0 0.0
    %222 = vmatpush1.msra.mxu0 0.0
    %223 = vmatprep.subr.mxu0 0.0
    %224 = vmatpush1.msra.mxu0 0.0
    %225 = vmatprep.subr.mxu0 0.0
    %226 = vmatpush1.msra.mxu0 0.0
    %227 = vmatprep.subr.mxu0 0.0
    %228 = vmatpush1.msra.mxu0 0.0
    %229 = vmatprep.subr.mxu0 0.0
    %230 = vmatpush1.msra.mxu0 0.0
    %231 = vmatprep.subr.mxu0 0.0
    %232 = vmatpush1.msra.mxu0 0.0
    %233 = vmatprep.subr.mxu0 0.0
    %234 = vmatpush1.msra.mxu0 0.0
    %235 = vmatprep.subr.mxu0 0.0
    %236 = vmatpush1.msra.mxu0 0.0
    %237 = vmatprep.subr.mxu0 0.0
    %238 = vmatpush1.msra.mxu0 0.0
    %239 = vmatprep.subr.mxu0 0.0
    %240 = vmatpush1.msra.mxu0 0.0
    %241 = vmatprep.subr.mxu0 0.0
    %242 = vmatpush1.msra.mxu0 0.0
    %243 = vmatprep.subr.mxu0 0.0
    %244 = vmatpush1.msra.mxu0 0.0
    %245 = vmatprep.subr.mxu0 0.0
    %246 = vmatpush1.msra.mxu0 0.0
    %247 = vmatprep.subr.mxu0 0.0
    %248 = vmatpush1.msra.mxu0 0.0
    %249 = vmatprep.subr.mxu0 0.0
    %250 = vmatpush1.msra.mxu0 0.0
    %251 = vmatprep.subr.mxu0 0.0
    %252 = vmatpush1.msra.mxu0 0.0
    %253 = vmatprep.subr.mxu0 0.0
    %254 = vmatpush1.msra.mxu0 0.0
    %255 = vmatprep.subr.mxu0 0.0
    %256 = vmatpush1.msra.mxu0 0.0
    %257 = vmatprep.subr.mxu0 0.0
    %258 = vmatpush1.msra.mxu0 0.0
    %259 = vmatprep.subr.mxu0 0.0
    %260 = vmatpush1.msra.mxu0 0.0
    %261 = vmatprep.subr.mxu0 0.0
    %262 = vmatpush1.msra.mxu0 0.0
    %263 = vmatprep.subr.mxu0 0.0
    %264 = vmatpush1.msra.mxu0 0.0
    %265 = vmatprep.subr.mxu0 0.0
    %266 = vmatpush1.msra.mxu0 0.0
    %267 = vmatprep.subr.mxu0 0.0
    %268 = vmatpush1.msra.mxu0 0.0
    %269 = vmatprep.subr.mxu0 0.0
    %270 = vmatpush1.msra.mxu0 0.0
    %271 = vmatprep.subr.mxu0 0.0
    %272 = vmatpush1.msra.mxu0 0.0
    %273 = vmatprep.subr.mxu0 0.0
    %274 = vmatpush1.msra.mxu0 0.0
    %275 = vmatprep.subr.mxu0 0.0
    %276 = vmatpush1.msra.mxu0 0.0
    %277 = vmatprep.subr.mxu0 0.0
    %278 = vmatpush1.msra.mxu0 0.0
    %279 = vmatprep.subr.mxu0 0.0
    %280 = vmatpush1.msra.mxu0 0.0
    %281 = vmatprep.mubr.f32.mxu0 0.0
    %282 = vmatmul.mubr.f32.gmra.mrb[0].mxu0 %v54
    %v283 = vpop.f32.mrb[0].mxu0
    %v284 = vadd.f32 0.0, %v283
    %v285 = vpop.f32.mrb[0].mxu0
    %286 = vdwg.mxu0
    %v287 = vmul.f32 %v284, 0.25
    %v288 = vadd.f32 %v287, 1e-08
    %v289 = vrsqrt.pop %v288
    %v290 = vmul.f32 %v288, %v289
    %vm291 = vcmp.eq.f32.partialorder %v288, inf
    %v292 = vsel %vm291, %v288, %v290
    %vm293 = vcmp.eq.f32.partialorder %v288, 0.0
    %v294 = vand.u32 %v288, 2147483648
    %v295 = vsel %vm293, %v294, %v292
    %v296 = vsel %vm134, %v295, 0.0
    %297 = vadd.xlane.f32.xlu0 %v296
    %v298 = vpop.xlane.xlu0 %297
    %v299 = vrcp.pop 128.0
    %v300 = vmul.f32 %v298, %v299
    %v301 = vld [vmem:[%s2] sm:$0x1]
    %v302 = vlaneseq
    %v303 = vshrl.u32 %v302, 7
    %v304 = vsub.s32 0, %v303
    %v305 = vrot.slane %v301, %v304
    %v306 = vmul.f32 %v300, %v305
    %v308 = vsel %vm134, %v306, 0
    %310 = vmatprep.subr.mxu0 0.0
    %311 = vmatpush1.msra.mxu0 %v308
    %312 = vmatprep.subr.mxu0 0.0
    %313 = vmatpush1.msra.mxu0 0.0
    %314 = vmatprep.subr.mxu0 0.0
    %315 = vmatpush1.msra.mxu0 0.0
    %316 = vmatprep.subr.mxu0 0.0
    %317 = vmatpush1.msra.mxu0 0.0
    %318 = vmatprep.subr.mxu0 0.0
    %319 = vmatpush1.msra.mxu0 0.0
    %320 = vmatprep.subr.mxu0 0.0
    %321 = vmatpush1.msra.mxu0 0.0
    %322 = vmatprep.subr.mxu0 0.0
    %323 = vmatpush1.msra.mxu0 0.0
    %324 = vmatprep.subr.mxu0 0.0
    %325 = vmatpush1.msra.mxu0 0.0
    %326 = vmatprep.subr.mxu0 0.0
    %327 = vmatpush1.msra.mxu0 0.0
    %328 = vmatprep.subr.mxu0 0.0
    %329 = vmatpush1.msra.mxu0 0.0
    %330 = vmatprep.subr.mxu0 0.0
    %331 = vmatpush1.msra.mxu0 0.0
    %332 = vmatprep.subr.mxu0 0.0
    %333 = vmatpush1.msra.mxu0 0.0
    %334 = vmatprep.subr.mxu0 0.0
    %335 = vmatpush1.msra.mxu0 0.0
    %336 = vmatprep.subr.mxu0 0.0
    %337 = vmatpush1.msra.mxu0 0.0
    %338 = vmatprep.subr.mxu0 0.0
    %339 = vmatpush1.msra.mxu0 0.0
    %340 = vmatprep.subr.mxu0 0.0
    %341 = vmatpush1.msra.mxu0 0.0
    %342 = vmatprep.subr.mxu0 0.0
    %343 = vmatpush1.msra.mxu0 0.0
    %344 = vmatprep.subr.mxu0 0.0
    %345 = vmatpush1.msra.mxu0 0.0
    %346 = vmatprep.subr.mxu0 0.0
    %347 = vmatpush1.msra.mxu0 0.0
    %348 = vmatprep.subr.mxu0 0.0
    %349 = vmatpush1.msra.mxu0 0.0
    %350 = vmatprep.subr.mxu0 0.0
    %351 = vmatpush1.msra.mxu0 0.0
    %352 = vmatprep.subr.mxu0 0.0
    %353 = vmatpush1.msra.mxu0 0.0
    %354 = vmatprep.subr.mxu0 0.0
    %355 = vmatpush1.msra.mxu0 0.0
    %356 = vmatprep.subr.mxu0 0.0
    %357 = vmatpush1.msra.mxu0 0.0
    %358 = vmatprep.subr.mxu0 0.0
    %359 = vmatpush1.msra.mxu0 0.0
    %360 = vmatprep.subr.mxu0 0.0
    %361 = vmatpush1.msra.mxu0 0.0
    %362 = vmatprep.subr.mxu0 0.0
    %363 = vmatpush1.msra.mxu0 0.0
    %364 = vmatprep.subr.mxu0 0.0
    %365 = vmatpush1.msra.mxu0 0.0
    %366 = vmatprep.subr.mxu0 0.0
    %367 = vmatpush1.msra.mxu0 0.0
    %368 = vmatprep.subr.mxu0 0.0
    %369 = vmatpush1.msra.mxu0 0.0
    %370 = vmatprep.subr.mxu0 0.0
    %371 = vmatpush1.msra.mxu0 0.0
    %372 = vmatprep.subr.mxu0 0.0
    %373 = vmatpush1.msra.mxu0 0.0
    %374 = vmatprep.mubr.f32.mxu0 0.0
    %375 = vmatmul.mubr.f32.gmra.mrb[0].mxu0 %v129
    %v376 = vpop.f32.mrb[0].mxu0
    %v377 = vadd.f32 0.0, %v376
    %v378 = vpop.f32.mrb[0].mxu0
    %379 = vmatprep.mubr.f32.mxu0 0.0
    %380 = vmatmul.mubr.f32.gmra.mrb[0].mxu0 %v132
    %v381 = vpop.f32.mrb[0].mxu0
    %v382 = vadd.f32 0.0, %v381
    %v383 = vpop.f32.mrb[0].mxu0
    %384 = vdwg.mxu0
    %v385 = vpack.c.bf16 %v17, %v16
    %v386 = vld [vmem:[%s1] sm:$0xf]
    %v387 = vld [vmem:[%s1 + $0x4] sm:$0xf]
    %v388 = vld [vmem:[%s1 + $0x8] sm:$0xf]
    %v389 = vld [vmem:[%s1 + $0xc] sm:$0xf]
    %v390 = vld [vmem:[%s1 + $0x10] sm:$0xf]
    %v391 = vld [vmem:[%s1 + $0x14] sm:$0xf]
    %v392 = vld [vmem:[%s1 + $0x18] sm:$0xf]
    %v393 = vld [vmem:[%s1 + $0x1c] sm:$0xf]
    %v394 = vld [vmem:[%s1 + $0x20] sm:$0xf]
    %v395 = vld [vmem:[%s1 + $0x24] sm:$0xf]
    %v396 = vld [vmem:[%s1 + $0x28] sm:$0xf]
    %v397 = vld [vmem:[%s1 + $0x2c] sm:$0xf]
    %v398 = vld [vmem:[%s1 + $0x30] sm:$0xf]
    %v399 = vld [vmem:[%s1 + $0x34] sm:$0xf]
    %v400 = vld [vmem:[%s1 + $0x38] sm:$0xf]
    %v401 = vld [vmem:[%s1 + $0x3c] sm:$0xf]
    %v418 = vunpack.c.l.b16 %v386
    %v419 = vunpack.c.l.b16 %v387
    %v420 = vunpack.c.l.b16 %v388
    %v421 = vunpack.c.l.b16 %v389
    %v422 = vunpack.c.l.b16 %v390
    %v423 = vunpack.c.l.b16 %v391
    %v424 = vunpack.c.l.b16 %v392
    %v425 = vunpack.c.l.b16 %v393
    %v426 = vunpack.c.l.b16 %v394
    %v427 = vunpack.c.l.b16 %v395
    %v428 = vunpack.c.l.b16 %v396
    %v429 = vunpack.c.l.b16 %v397
    %v430 = vunpack.c.l.b16 %v398
    %v431 = vunpack.c.l.b16 %v399
    %v432 = vunpack.c.l.b16 %v400
    %v433 = vunpack.c.l.b16 %v401
    %v434 = vpack.c.b16 %v419, %v418
    %v435 = vpack.c.b16 %v421, %v420
    %v436 = vpack.c.b16 %v423, %v422
    %v437 = vpack.c.b16 %v425, %v424
    %v438 = vpack.c.b16 %v427, %v426
    %v439 = vpack.c.b16 %v429, %v428
    %v440 = vpack.c.b16 %v431, %v430
    %v441 = vpack.c.b16 %v433, %v432
    %450 = vmatprep.subr.bf16.mxu0 0
    %451 = vmatpush1.bf16.msra.mxu0 %v434
    %452 = vmatprep.subr.bf16.mxu0 0
    %453 = vmatpush1.bf16.msra.mxu0 %v435
    %454 = vmatprep.subr.bf16.mxu0 0
    %455 = vmatpush1.bf16.msra.mxu0 %v436
    %456 = vmatprep.subr.bf16.mxu0 0
    %457 = vmatpush1.bf16.msra.mxu0 %v437
    %458 = vmatprep.subr.bf16.mxu0 0
    %459 = vmatpush1.bf16.msra.mxu0 %v438
    %460 = vmatprep.subr.bf16.mxu0 0
    %461 = vmatpush1.bf16.msra.mxu0 %v439
    %462 = vmatprep.subr.bf16.mxu0 0
    %463 = vmatpush1.bf16.msra.mxu0 %v440
    %464 = vmatprep.subr.bf16.mxu0 0
    %465 = vmatpush1.bf16.msra.mxu0 %v441
    %466 = vmatprep.subr.bf16.mxu0 0
    %467 = vmatpush1.bf16.msra.mxu0 0
    %468 = vmatprep.subr.bf16.mxu0 0
    %469 = vmatpush1.bf16.msra.mxu0 0
    %470 = vmatprep.subr.bf16.mxu0 0
    %471 = vmatpush1.bf16.msra.mxu0 0
    %472 = vmatprep.subr.bf16.mxu0 0
    %473 = vmatpush1.bf16.msra.mxu0 0
    %474 = vmatprep.subr.bf16.mxu0 0
    %475 = vmatpush1.bf16.msra.mxu0 0
    %476 = vmatprep.subr.bf16.mxu0 0
    %477 = vmatpush1.bf16.msra.mxu0 0
    %478 = vmatprep.subr.bf16.mxu0 0
    %479 = vmatpush1.bf16.msra.mxu0 0
    %480 = vmatprep.subr.bf16.mxu0 0
    %481 = vmatpush1.bf16.msra.mxu0 0
    %482 = vmatprep.mubr.bf16.mxu0 0
    %483 = vmatmul.mubr.bf16.gmra.mrb[0].mxu0 %v385
    %v484 = vpop.f32.mrb[0].mxu0
    %v485 = vadd.f32 %v377, %v484
    %v486 = vpop.f32.mrb[0].mxu0
    %v487 = vpop.f32.mrb[0].mxu0
    %v488 = vadd.f32 %v382, %v487
    %v489 = vpop.f32.mrb[0].mxu0
    %490 = vdwg.mxu0
    %v491 = vld [vmem:[%s2 + $0x1] sm:$0x1]
    %v492 = vlaneseq
    %v493 = vshrl.u32 %v492, 7
    %v494 = vsub.s32 0, %v493
    %v495 = vrot.slane %v491, %v494
    %v496 = vadd.f32 %v485, %v495
    %v497 = vadd.f32 %v488, %v495
    %v498 = vmul.f32 %v496, 0.2
    %v499 = vmul.f32 %v497, 0.2
    %v500 = vmax.f32 %v496, %v498
    %v501 = vmax.f32 %v497, %v499
    %v502 = vld [vmem:[%s2 + $0x8] sm:$0xff]
    %v503 = vld [vmem:[%s2 + $0x2] sm:$0x1]
    %v504 = vlaneseq
    %v505 = vshrl.u32 %v504, 7
    %v506 = vsub.s32 0, %v505
    %v507 = vrot.slane %v503, %v506
    %508 = vmatprep.subr.mxu0 0.0
    %509 = vmatpush1.xpose.msra.mxu0 %v502
    %510 = vmatprep.subr.mxu0 0.0
    %511 = vmatpush1.xpose.msra.mxu0 0.0
    %512 = vmatprep.subr.mxu0 0.0
    %513 = vmatpush1.xpose.msra.mxu0 0.0
    %514 = vmatprep.subr.mxu0 0.0
    %515 = vmatpush1.xpose.msra.mxu0 0.0
    %516 = vmatprep.subr.mxu0 0.0
    %517 = vmatpush1.xpose.msra.mxu0 0.0
    %518 = vmatprep.subr.mxu0 0.0
    %519 = vmatpush1.xpose.msra.mxu0 0.0
    %520 = vmatprep.subr.mxu0 0.0
    %521 = vmatpush1.xpose.msra.mxu0 0.0
    %522 = vmatprep.subr.mxu0 0.0
    %523 = vmatpush1.xpose.msra.mxu0 0.0
    %524 = vmatprep.subr.mxu0 0.0
    %525 = vmatpush1.xpose.msra.mxu0 0.0
    %526 = vmatprep.subr.mxu0 0.0
    %527 = vmatpush1.xpose.msra.mxu0 0.0
    %528 = vmatprep.subr.mxu0 0.0
    %529 = vmatpush1.xpose.msra.mxu0 0.0
    %530 = vmatprep.subr.mxu0 0.0
    %531 = vmatpush1.xpose.msra.mxu0 0.0
    %532 = vmatprep.subr.mxu0 0.0
    %533 = vmatpush1.xpose.msra.mxu0 0.0
    %534 = vmatprep.subr.mxu0 0.0
    %535 = vmatpush1.xpose.msra.mxu0 0.0
    %536 = vmatprep.subr.mxu0 0.0
    %537 = vmatpush1.xpose.msra.mxu0 0.0
    %538 = vmatprep.subr.mxu0 0.0
    %539 = vmatpush1.xpose.msra.mxu0 0.0
    %540 = vmatprep.subr.mxu0 0.0
    %541 = vmatpush1.xpose.msra.mxu0 0.0
    %542 = vmatprep.subr.mxu0 0.0
    %543 = vmatpush1.xpose.msra.mxu0 0.0
    %544 = vmatprep.subr.mxu0 0.0
    %545 = vmatpush1.xpose.msra.mxu0 0.0
    %546 = vmatprep.subr.mxu0 0.0
    %547 = vmatpush1.xpose.msra.mxu0 0.0
    %548 = vmatprep.subr.mxu0 0.0
    %549 = vmatpush1.xpose.msra.mxu0 0.0
    %550 = vmatprep.subr.mxu0 0.0
    %551 = vmatpush1.xpose.msra.mxu0 0.0
    %552 = vmatprep.subr.mxu0 0.0
    %553 = vmatpush1.xpose.msra.mxu0 0.0
    %554 = vmatprep.subr.mxu0 0.0
    %555 = vmatpush1.xpose.msra.mxu0 0.0
    %556 = vmatprep.subr.mxu0 0.0
    %557 = vmatpush1.xpose.msra.mxu0 0.0
    %558 = vmatprep.subr.mxu0 0.0
    %559 = vmatpush1.xpose.msra.mxu0 0.0
    %560 = vmatprep.subr.mxu0 0.0
    %561 = vmatpush1.xpose.msra.mxu0 0.0
    %562 = vmatprep.subr.mxu0 0.0
    %563 = vmatpush1.xpose.msra.mxu0 0.0
    %564 = vmatprep.subr.mxu0 0.0
    %565 = vmatpush1.xpose.msra.mxu0 0.0
    %566 = vmatprep.subr.mxu0 0.0
    %567 = vmatpush1.xpose.msra.mxu0 0.0
    %568 = vmatprep.subr.mxu0 0.0
    %569 = vmatpush1.xpose.msra.mxu0 0.0
    %570 = vmatprep.subr.mxu0 0.0
    %571 = vmatpush1.xpose.msra.mxu0 0.0
    %572 = vmatprep.mubr.f32.mxu0 0.0
    %573 = vmatmul.mubr.f32.gmra.mrb[0].mxu0 %v500
    %v574 = vpop.f32.mrb[0].mxu0
    %v575 = vadd.f32 %v507, %v574
    %v576 = vpop.f32.mrb[0].mxu0
    %577 = vmatprep.mubr.f32.mxu0 0.0
    %578 = vmatmul.mubr.f32.gmra.mrb[0].mxu0 %v501
    %v579 = vpop.f32.mrb[0].mxu0
    %v580 = vadd.f32 %v507, %v579
    %v581 = vpop.f32.mrb[0].mxu0
    %582 = vdwg.mxu0
    %v583 = vmul.f32 %v575, 0.2
    %v584 = vmul.f32 %v580, 0.2
    %v585 = vmax.f32 %v575, %v583
    %v586 = vmax.f32 %v580, %v584
    %v587 = vld [vmem:[%s2 + $0x3] sm:$0x1]
    %v588 = vld [vmem:[%s2 + $0x4] sm:$0x1]
    %590 = vset.pattern.permute.xlu0 0
    %591 = vperm.xlu0 %590, %v588
    %v592 = vpop.permute.xlu0 %591
    %vm594 = vcmask 64512
    %v596 = vsel %vm594, %v587, 0
    %v599 = vsel %vm594, %v585, 0
    %v602 = vsel %vm594, %v586, 0
    %604 = vmatprep.subr.mxu0 0.0
    %605 = vmatpush1.xpose.msra.mxu0 %v599
    %606 = vmatprep.subr.mxu0 0.0
    %607 = vmatpush1.xpose.msra.mxu0 %v602
    %608 = vmatprep.subr.mxu0 0.0
    %609 = vmatpush1.xpose.msra.mxu0 0.0
    %610 = vmatprep.subr.mxu0 0.0
    %611 = vmatpush1.xpose.msra.mxu0 0.0
    %612 = vmatprep.subr.mxu0 0.0
    %613 = vmatpush1.xpose.msra.mxu0 0.0
    %614 = vmatprep.subr.mxu0 0.0
    %615 = vmatpush1.xpose.msra.mxu0 0.0
    %616 = vmatprep.subr.mxu0 0.0
    %617 = vmatpush1.xpose.msra.mxu0 0.0
    %618 = vmatprep.subr.mxu0 0.0
    %619 = vmatpush1.xpose.msra.mxu0 0.0
    %620 = vmatprep.subr.mxu0 0.0
    %621 = vmatpush1.xpose.msra.mxu0 0.0
    %622 = vmatprep.subr.mxu0 0.0
    %623 = vmatpush1.xpose.msra.mxu0 0.0
    %624 = vmatprep.subr.mxu0 0.0
    %625 = vmatpush1.xpose.msra.mxu0 0.0
    %626 = vmatprep.subr.mxu0 0.0
    %627 = vmatpush1.xpose.msra.mxu0 0.0
    %628 = vmatprep.subr.mxu0 0.0
    %629 = vmatpush1.xpose.msra.mxu0 0.0
    %630 = vmatprep.subr.mxu0 0.0
    %631 = vmatpush1.xpose.msra.mxu0 0.0
    %632 = vmatprep.subr.mxu0 0.0
    %633 = vmatpush1.xpose.msra.mxu0 0.0
    %634 = vmatprep.subr.mxu0 0.0
    %635 = vmatpush1.xpose.msra.mxu0 0.0
    %636 = vmatprep.subr.mxu0 0.0
    %637 = vmatpush1.xpose.msra.mxu0 0.0
    %638 = vmatprep.subr.mxu0 0.0
    %639 = vmatpush1.xpose.msra.mxu0 0.0
    %640 = vmatprep.subr.mxu0 0.0
    %641 = vmatpush1.xpose.msra.mxu0 0.0
    %642 = vmatprep.subr.mxu0 0.0
    %643 = vmatpush1.xpose.msra.mxu0 0.0
    %644 = vmatprep.subr.mxu0 0.0
    %645 = vmatpush1.xpose.msra.mxu0 0.0
    %646 = vmatprep.subr.mxu0 0.0
    %647 = vmatpush1.xpose.msra.mxu0 0.0
    %648 = vmatprep.subr.mxu0 0.0
    %649 = vmatpush1.xpose.msra.mxu0 0.0
    %650 = vmatprep.subr.mxu0 0.0
    %651 = vmatpush1.xpose.msra.mxu0 0.0
    %652 = vmatprep.subr.mxu0 0.0
    %653 = vmatpush1.xpose.msra.mxu0 0.0
    %654 = vmatprep.subr.mxu0 0.0
    %655 = vmatpush1.xpose.msra.mxu0 0.0
    %656 = vmatprep.subr.mxu0 0.0
    %657 = vmatpush1.xpose.msra.mxu0 0.0
    %658 = vmatprep.subr.mxu0 0.0
    %659 = vmatpush1.xpose.msra.mxu0 0.0
    %660 = vmatprep.subr.mxu0 0.0
    %661 = vmatpush1.xpose.msra.mxu0 0.0
    %662 = vmatprep.subr.mxu0 0.0
    %663 = vmatpush1.xpose.msra.mxu0 0.0
    %664 = vmatprep.subr.mxu0 0.0
    %665 = vmatpush1.xpose.msra.mxu0 0.0
    %666 = vmatprep.subr.mxu0 0.0
    %667 = vmatpush1.xpose.msra.mxu0 0.0
    %668 = vmatprep.mubr.f32.mxu0 0.0
    %669 = vmatmul.mubr.f32.gmra.mrb[0].mxu0 %v596
    %v670 = vpop.f32.mrb[0].mxu0
    %v671 = vadd.f32 %v592, %v670
    %v672 = vpop.f32.mrb[0].mxu0
    %673 = vdwg.mxu0
    %vm674 = vcmask 122880
    %675 = vst.msk [vmem:[#allocation2] sm:$0x1] %vm674, %v671
    // Predicated region
    $region14: #{dis_final_block.1} parent=1 // pred_check
      _
    $region15: #{dis_final_block.1} parent=1 // pred_check_branch
      %677 = sbr.rel (0) target = $region17
    $region16: #{dis_final_block.1} parent=1 // pred_region
      %s679 = ssub.s32 16, 16
      %680 = vsyncadd [#allocation3], %s679
      %s682 = sshll.u32 [#allocation2], 4
      %s683 = int_to_ptr.vmem [resolvable:$true] %s682
      %685 = dma.vmem_to_hbm [thread:$0]  %s683, 16, %s3, [#allocation3]
    $region17: #{dis_final_block.1} parent=1 // pred_fallthru
      _
    // Predicated region
    $region18: #{dis_final_block.1} parent=1 // pred_check
      _
    $region19: #{dis_final_block.1} parent=1 // pred_check_branch
      %687 = sbr.rel (0) target = $region21
    $region20: #{dis_final_block.1} parent=1 // pred_region
      %688 = dma.done [#allocation3], 16
    $region21: #{dis_final_block.1} parent=1 // pred_fallthru
      _
    %689 = vsyncpa [#allocation3], 1

</llo_original>
